<compile_context>
chip_gen: v5e
topology: v5e:2x2
jax: 0.10.0
libtpu: 0.0.40
codegen_flags: <defaults>
</compile_context>

<pallas_src>
import functools

import jax
import jax.numpy as jnp
from jax.experimental import pallas as pl
from jax.experimental.pallas import tpu as pltpu


# ----------------------------------------------------------------------------
# Pallas kernel: (4*Cout, K) @ (K, TILE_P) matmul + bias + LSTM gating
# ----------------------------------------------------------------------------
def _convlstm_kernel(w_ref, b_ref, patches_ref, c_cur_ref, h_next_ref, c_next_ref):
    # w:       (4*Cout, K)        resident (constant index_map)
    # b:       (4*Cout, 1)        resident
    # patches: (K, TILE_P)        streamed, lane-dense
    # c_cur:   (Cout, TILE_P)     streamed
    # outputs: (Cout, TILE_P)     streamed
    cout = c_cur_ref.shape[0]

    # Convolution as a single MXU matmul; f32 accumulation.
    gates = jnp.dot(w_ref[...], patches_ref[...],
                    preferred_element_type=jnp.float32)
    gates = gates + b_ref[...]                      # broadcast along lanes

    # Gate order matches torch.split(..., output_channels, dim=1): f, i, c, o.
    # Slices are along sublanes at multiples of Cout (8-aligned for f32).
    f = jax.nn.sigmoid(gates[0 * cout:1 * cout, :])
    i = jax.nn.sigmoid(gates[1 * cout:2 * cout, :])
    g = jnp.tanh(gates[2 * cout:3 * cout, :])
    o = jax.nn.sigmoid(gates[3 * cout:4 * cout, :])

    c_next = f * c_cur_ref[...] + i * g
    h_next = o * jnp.tanh(c_next)

    c_next_ref[...] = c_next.astype(c_next_ref.dtype)
    h_next_ref[...] = h_next.astype(h_next_ref.dtype)


def _choose_tile_p(k_rows, cout, compute_bytes):
    """Largest TILE_P in {512, 256, 128} whose double-buffered streamed
    footprint (patches + c_cur + 2 outputs) stays under ~8 MiB, leaving ample
    headroom vs the scoped VMEM limit on v5e/v6e and v7x's 64 MiB VMEM."""
    tile = 512

    def streamed(t):
        return 2 * t * (k_rows * compute_bytes + 3 * cout * 4)

    while tile > 128 and streamed(tile) > 8 * 1024 * 1024:
        tile //= 2
    return tile


# ----------------------------------------------------------------------------
# Wrapper: layout/im2col glue (plain JAX) + tiled pallas_call
# ----------------------------------------------------------------------------
@functools.partial(jax.jit, static_argnames=("kernel_size", "compute_dtype"))
def convlstm_cell_forward(inputs, h_cur, c_cur, weight, bias, *,
                          kernel_size, compute_dtype=jnp.bfloat16):
    """inputs: (N, Cin, H, W); h_cur/c_cur: (N, Cout, H, W);
    weight: (4*Cout, Cin+Cout, k, k) [PyTorch OIHW]; bias: (4*Cout,)."""
    N, Cin, H, W = inputs.shape
    Cout = h_cur.shape[1]
    k = kernel_size
    pad = (k - 1) // 2
    Ctot = Cin + Cout
    P = N * H * W
    K = k * k * Ctot

    compute_bytes = jnp.dtype(compute_dtype).itemsize
    TILE_P = _choose_tile_p(K, Cout, compute_bytes)
    P_pad = pl.cdiv(P, TILE_P) * TILE_P

    # combined = cat((h_cur, inputs), dim=1)  -- h first, then inputs (as in torch)
    combined = jnp.concatenate([h_cur, inputs], axis=1)            # (N, Ctot, H, W)
    combined = jnp.transpose(combined, (1, 0, 2, 3))               # (Ctot, N, H, W)
    combined = jnp.pad(combined,
                       ((0, 0), (0, 0), (pad, pad), (pad, pad)))
    combined = combined.astype(compute_dtype)

    # im2col, transposed: rows ordered (ky, kx, channel), columns = flat pixels.
    rows = []
    for dy in range(k):
        for dx in range(k):
            rows.append(combined[:, :, dy:dy + H, dx:dx + W].reshape(Ctot, P))
    patches = jnp.concatenate(rows, axis=0)                        # (K, P)
    patches = jnp.pad(patches, ((0, 0), (0, P_pad - P)))

    # Weight: OIHW -> (4*Cout, ky, kx, in_ch) -> (4*Cout, K); matches patch rows.
    w_mat = jnp.transpose(weight, (0, 2, 3, 1)).reshape(4 * Cout, K)
    w_mat = w_mat.astype(compute_dtype)
    b_mat = bias.reshape(4 * Cout, 1).astype(jnp.float32)

    # Cell state, pixel-on-lanes layout.
    c_flat = jnp.transpose(c_cur, (1, 0, 2, 3)).reshape(Cout, P).astype(jnp.float32)
    c_flat = jnp.pad(c_flat, ((0, 0), (0, P_pad - P)))

    grid = (P_pad // TILE_P,)
    h_flat, c_next_flat = pl.pallas_call(
        _convlstm_kernel,
        out_shape=(jax.ShapeDtypeStruct((Cout, P_pad), jnp.float32),
                   jax.ShapeDtypeStruct((Cout, P_pad), jnp.float32)),
        grid_spec=pltpu.PrefetchScalarGridSpec(
            num_scalar_prefetch=0,
            grid=grid,
            in_specs=[
                pl.BlockSpec((4 * Cout, K), lambda i: (0, 0)),       # resident weight
                pl.BlockSpec((4 * Cout, 1), lambda i: (0, 0)),       # resident bias
                pl.BlockSpec((K, TILE_P), lambda i: (0, i)),         # streamed patches
                pl.BlockSpec((Cout, TILE_P), lambda i: (0, i)),      # streamed c_cur
            ],
            out_specs=(pl.BlockSpec((Cout, TILE_P), lambda i: (0, i)),
                       pl.BlockSpec((Cout, TILE_P), lambda i: (0, i))),
        ),
        compiler_params=pltpu.CompilerParams(
            dimension_semantics=("parallel",),
            vmem_limit_bytes=32 * 1024 * 1024,
        ),
    )(w_mat, b_mat, patches, c_flat)

    # Back to NCHW.
    h_next = jnp.transpose(h_flat[:, :P].reshape(Cout, N, H, W), (1, 0, 2, 3))
    c_next = jnp.transpose(c_next_flat[:, :P].reshape(Cout, N, H, W), (1, 0, 2, 3))
    return h_next, c_next


# ----------------------------------------------------------------------------
# Pure-JAX reference (mirrors the PyTorch module exactly)
# ----------------------------------------------------------------------------
def convlstm_cell_reference(inputs, h_cur, c_cur, weight, bias, *, kernel_size):
    pad = (kernel_size - 1) // 2
    combined = jnp.concatenate([h_cur, inputs], axis=1)
    conv = jax.lax.conv_general_dilated(
        combined, weight, window_strides=(1, 1),
        padding=((pad, pad), (pad, pad)),
        dimension_numbers=("NCHW", "OIHW", "NCHW"),
    ) + bias.reshape(1, -1, 1, 1)
    f_in, i_in, c_in, o_in = jnp.split(conv, 4, axis=1)
    f = jax.nn.sigmoid(f_in)
    i = jax.nn.sigmoid(i_in)
    c = jnp.tanh(c_in)
    o = jax.nn.sigmoid(o_in)
    c_next = f * c_cur + i * c
    h_next = o * jnp.tanh(c_next)
    return h_next, c_next


if __name__ == "__main__":
    # Small, module-consistent shapes.
    N, Cin, Cout, H, W, K = 2, 4, 8, 16, 16, 3

    key = jax.random.PRNGKey(0)
    k_x, k_h, k_c, k_w, k_b = jax.random.split(key, 5)

    x = jax.random.normal(k_x, (N, Cin, H, W), dtype=jnp.float32)
    h0 = jax.random.normal(k_h, (N, Cout, H, W), dtype=jnp.float32)
    c0 = jax.random.normal(k_c, (N, Cout, H, W), dtype=jnp.float32)

    # Deterministic Conv2d parameter init (PyTorch-style uniform bound).
    fan_in = (Cin + Cout) * K * K
    bound = 1.0 / jnp.sqrt(fan_in)
    weight = jax.random.uniform(k_w, (4 * Cout, Cin + Cout, K, K),
                                minval=-bound, maxval=bound, dtype=jnp.float32)
    bias = jax.random.uniform(k_b, (4 * Cout,),
                              minval=-bound, maxval=bound, dtype=jnp.float32)

    h_ref, c_ref = convlstm_cell_reference(x, h0, c0, weight, bias, kernel_size=K)

    # f32 compute path: tight check against the reference.
    h_f32, c_f32 = convlstm_cell_forward(x, h0, c0, weight, bias,
                                         kernel_size=K, compute_dtype=jnp.float32)
    jax.block_until_ready((h_f32, c_f32))
    assert h_f32.shape == (N, Cout, H, W) and c_f32.shape == (N, Cout, H, W)
    assert jnp.allclose(h_f32, h_ref, atol=1e-4, rtol=1e-4)
    assert jnp.allclose(c_f32, c_ref, atol=1e-4, rtol=1e-4)

    # bf16 matmul path (default, perf config): loose check (bf16 operand rounding).
    h_bf, c_bf = convlstm_cell_forward(x, h0, c0, weight, bias, kernel_size=K)
    jax.block_until_ready((h_bf, c_bf))
    assert jnp.allclose(h_bf, h_ref, atol=3e-2, rtol=3e-2)
    assert jnp.allclose(c_bf, c_ref, atol=3e-2, rtol=3e-2)

    print("KERNEL_OK")
</pallas_src>

<mosaic_0001>
module attributes {stable_mosaic.version = 11 : i64} {
  func.func @_convlstm_kernel(%arg0: i32, %arg1: memref<32x108xf32, #tpu.memory_space<vmem>>, %arg2: memref<32x1xf32, #tpu.memory_space<vmem>>, %arg3: memref<108x512xf32, #tpu.memory_space<vmem>>, %arg4: memref<8x512xf32, #tpu.memory_space<vmem>>, %arg5: memref<8x512xf32, #tpu.memory_space<vmem>>, %arg6: memref<8x512xf32, #tpu.memory_space<vmem>>) attributes {dimension_semantics = [#tpu.dimension_semantics<parallel>], iteration_bounds = array<i64: 1>, scalar_prefetch = 0 : i64, scratch_operands = 0 : i64, tpu.core_type = #tpu.core_type<tc>, window_params = [{pipeline_mode = #tpu.pipeline_mode<synchronous>, transform_indices = @transform_0, window_bounds = array<i64: 32, 108>}, {pipeline_mode = #tpu.pipeline_mode<synchronous>, transform_indices = @transform_1, window_bounds = array<i64: 32, 1>}, {transform_indices = @transform_2, window_bounds = array<i64: 108, 512>}, {transform_indices = @transform_3, window_bounds = array<i64: 8, 512>}, {transform_indices = @transform_4, window_bounds = array<i64: 8, 512>}, {transform_indices = @transform_5, window_bounds = array<i64: 8, 512>}]} {
    %c0 = arith.constant 0 : index
    %c0_0 = arith.constant 0 : index
    %0 = vector.load %arg1[%c0, %c0_0] : memref<32x108xf32, #tpu.memory_space<vmem>>, vector<32x108xf32>
    %c0_1 = arith.constant 0 : index
    %c0_2 = arith.constant 0 : index
    %1 = vector.load %arg3[%c0_1, %c0_2] : memref<108x512xf32, #tpu.memory_space<vmem>>, vector<108x512xf32>
    %cst = arith.constant dense<0.000000e+00> : vector<32x512xf32>
    %2 = tpu.matmul %0, %1, %cst {dimension_numbers = #tpu.dot_dimension_numbers<[1], [0], [0], [1], [0, 0, 1, 1], [], []>} : vector<32x108xf32>, vector<108x512xf32>, vector<32x512xf32> -> vector<32x512xf32>
    %c0_3 = arith.constant 0 : index
    %c0_4 = arith.constant 0 : index
    %3 = vector.load %arg2[%c0_3, %c0_4] : memref<32x1xf32, #tpu.memory_space<vmem>>, vector<32x1xf32>
    %4 = vector.broadcast %3 : vector<32x1xf32> to vector<32x512xf32>
    %5 = arith.addf %2, %4 : vector<32x512xf32>
    %6 = vector.extract_strided_slice %5 {offsets = [0, 0], sizes = [8, 512], strides = [1, 1]} : vector<32x512xf32> to vector<8x512xf32>
    %7 = arith.negf %6 : vector<8x512xf32>
    %8 = math.exp %7 : vector<8x512xf32>
    %cst_5 = arith.constant 1.000000e+00 : f32
    %9 = vector.broadcast %cst_5 : f32 to vector<8x512xf32>
    %10 = arith.addf %9, %8 : vector<8x512xf32>
    %11 = arith.divf %9, %10 : vector<8x512xf32>
    %12 = vector.extract_strided_slice %5 {offsets = [8, 0], sizes = [8, 512], strides = [1, 1]} : vector<32x512xf32> to vector<8x512xf32>
    %13 = arith.negf %12 : vector<8x512xf32>
    %14 = math.exp %13 : vector<8x512xf32>
    %cst_6 = arith.constant 1.000000e+00 : f32
    %15 = vector.broadcast %cst_6 : f32 to vector<8x512xf32>
    %16 = arith.addf %15, %14 : vector<8x512xf32>
    %17 = arith.divf %15, %16 : vector<8x512xf32>
    %18 = vector.extract_strided_slice %5 {offsets = [16, 0], sizes = [8, 512], strides = [1, 1]} : vector<32x512xf32> to vector<8x512xf32>
    %19 = math.tanh %18 : vector<8x512xf32>
    %20 = vector.extract_strided_slice %5 {offsets = [24, 0], sizes = [8, 512], strides = [1, 1]} : vector<32x512xf32> to vector<8x512xf32>
    %21 = arith.negf %20 : vector<8x512xf32>
    %22 = math.exp %21 : vector<8x512xf32>
    %cst_7 = arith.constant 1.000000e+00 : f32
    %23 = vector.broadcast %cst_7 : f32 to vector<8x512xf32>
    %24 = arith.addf %23, %22 : vector<8x512xf32>
    %25 = arith.divf %23, %24 : vector<8x512xf32>
    %c0_8 = arith.constant 0 : index
    %c0_9 = arith.constant 0 : index
    %26 = vector.load %arg4[%c0_8, %c0_9] : memref<8x512xf32, #tpu.memory_space<vmem>>, vector<8x512xf32>
    %27 = arith.mulf %11, %26 : vector<8x512xf32>
    %28 = arith.mulf %17, %19 : vector<8x512xf32>
    %29 = arith.addf %27, %28 : vector<8x512xf32>
    %30 = math.tanh %29 : vector<8x512xf32>
    %31 = arith.mulf %25, %30 : vector<8x512xf32>
    %c0_10 = arith.constant 0 : index
    %c0_11 = arith.constant 0 : index
    %32 = vector.load %arg6[%c0_10, %c0_11] : memref<8x512xf32, #tpu.memory_space<vmem>>, vector<8x512xf32>
    tpu.vector_store %arg6[%c0_10, %c0_11], %29 {strides = array<i32>} : memref<8x512xf32, #tpu.memory_space<vmem>>, vector<8x512xf32>,
    %c0_12 = arith.constant 0 : index
    %c0_13 = arith.constant 0 : index
    %33 = vector.load %arg5[%c0_12, %c0_13] : memref<8x512xf32, #tpu.memory_space<vmem>>, vector<8x512xf32>
    tpu.vector_store %arg5[%c0_12, %c0_13], %31 {strides = array<i32>} : memref<8x512xf32, #tpu.memory_space<vmem>>, vector<8x512xf32>,
    return
  }
  func.func @transform_0(%arg0: i32) -> (i32, i32) {
    %c0_i32 = arith.constant 0 : i32
    %c0_i32_0 = arith.constant 0 : i32
    %c0_i32_1 = arith.constant 0 : i32
    return %c0_i32, %c0_i32_0 : i32, i32
  }
  func.func @transform_1(%arg0: i32) -> (i32, i32) {
    %c0_i32 = arith.constant 0 : i32
    %c0_i32_0 = arith.constant 0 : i32
    %c0_i32_1 = arith.constant 0 : i32
    return %c0_i32, %c0_i32_0 : i32, i32
  }
  func.func @transform_2(%arg0: i32) -> (i32, i32) {
    %c0_i32 = arith.constant 0 : i32
    %c0_i32_0 = arith.constant 0 : i32
    return %c0_i32, %arg0 : i32, i32
  }
  func.func @transform_3(%arg0: i32) -> (i32, i32) {
    %c0_i32 = arith.constant 0 : i32
    %c0_i32_0 = arith.constant 0 : i32
    return %c0_i32, %arg0 : i32, i32
  }
  func.func @transform_4(%arg0: i32) -> (i32, i32) {
    %c0_i32 = arith.constant 0 : i32
    %c0_i32_0 = arith.constant 0 : i32
    return %c0_i32, %arg0 : i32, i32
  }
  func.func @transform_5(%arg0: i32) -> (i32, i32) {
    %c0_i32 = arith.constant 0 : i32
    %c0_i32_0 = arith.constant 0 : i32
    return %c0_i32, %arg0 : i32, i32
  }
}

</mosaic_0001>

<llo_original>
// kernel: convlstm_cell_forward.1
$region0: #{convlstm_cell_forward.1}
  #allocation0 [shape = 'u32[]', space=smem, size = 0x4, offset = 0x4, fixed_abs, tag = 'smem constant byte address 0x4 - core index']
  #allocation1 [shape = 'u32[72,128]{1,0:T(1,128)}', space=vmem, size = 0x9000, scoped, tag = 'internal scratch']
  %s0 = inlined_call_operand.vmem [shape: f32[32,108], index: 0, kind: input, shape index: {}]
  %s1 = inlined_call_operand.vmem [shape: f32[32,1], index: 1, kind: input, shape index: {}]
  %s2 = inlined_call_operand.vmem [shape: f32[108,512], index: 2, kind: input, shape index: {}]
  %s3 = inlined_call_operand.vmem [shape: f32[8,512], index: 3, kind: input, shape index: {}]
  %s4 = inlined_call_operand.vmem [shape: f32[8,512], index: 4, kind: output, shape index: {0}]
  %s5 = inlined_call_operand.vmem [shape: f32[8,512], index: 5, kind: output, shape index: {1}]
  %6 = xla_tuple %s4, %s5
  %s7 = sld [smem:[#allocation0]]
  $region34: #{convlstm_cell_forward.1} parent=0
    _
  %s9 = ssub.s32 1, %s7
  %s10 = scalar_select 0, %s9, %s7
  // Predicated region
  $region2: #{convlstm_cell_forward.1} parent=0 // pred_check
    _
  $region3: #{convlstm_cell_forward.1} parent=0 // pred_check_branch
    %12 = sbr.rel (0) target = $region5
  $region4: #{convlstm_cell_forward.1} parent=0 // pred_region
    _
  $region5: #{convlstm_cell_forward.1} parent=0 // pred_fallthru
    _
  // Predicated region
  $region6: #{convlstm_cell_forward.1} parent=0 // pred_check
    _
  $region7: #{convlstm_cell_forward.1} parent=0 // pred_check_branch
    %14 = sbr.rel (0) target = $region9
  $region8: #{convlstm_cell_forward.1} parent=0 // pred_region
    _
  $region9: #{convlstm_cell_forward.1} parent=0 // pred_fallthru
    _
  // Predicated region
  $region10: #{convlstm_cell_forward.1} parent=0 // pred_check
    _
  $region11: #{convlstm_cell_forward.1} parent=0 // pred_check_branch
    %16 = sbr.rel (0) target = $region13
  $region12: #{convlstm_cell_forward.1} parent=0 // pred_region
    _
  $region13: #{convlstm_cell_forward.1} parent=0 // pred_fallthru
    _
  // Predicated region
  $region14: #{convlstm_cell_forward.1} parent=0 // pred_check
    _
  $region15: #{convlstm_cell_forward.1} parent=0 // pred_check_branch
    %18 = sbr.rel (0) target = $region17
  $region16: #{convlstm_cell_forward.1} parent=0 // pred_region
    _
  $region17: #{convlstm_cell_forward.1} parent=0 // pred_fallthru
    _
  %v19 = vld [vmem:[%s0] sm:$0xff]
  %v20 = vld [vmem:[%s0 + $0x8] sm:$0xff]
  %v21 = vld [vmem:[%s0 + $0x10] sm:$0xff]
  %v22 = vld [vmem:[%s0 + $0x18] sm:$0xff]
  %v23 = vld [vmem:[%s2] sm:$0xff]
  %v24 = vld [vmem:[%s2 + $0x8] sm:$0xff]
  %v25 = vld [vmem:[%s2 + $0x10] sm:$0xff]
  %v26 = vld [vmem:[%s2 + $0x18] sm:$0xff]
  %v27 = vld [vmem:[%s2 + $0x20] sm:$0xff]
  %v28 = vld [vmem:[%s2 + $0x28] sm:$0xff]
  %v29 = vld [vmem:[%s2 + $0x30] sm:$0xff]
  %v30 = vld [vmem:[%s2 + $0x38] sm:$0xff]
  %v31 = vld [vmem:[%s2 + $0x40] sm:$0xff]
  %v32 = vld [vmem:[%s2 + $0x48] sm:$0xff]
  %v33 = vld [vmem:[%s2 + $0x50] sm:$0xff]
  %v34 = vld [vmem:[%s2 + $0x58] sm:$0xff]
  %v35 = vld [vmem:[%s2 + $0x60] sm:$0xff]
  %v36 = vld [vmem:[%s2 + $0x68] sm:$0xff]
  %v37 = vld [vmem:[%s2 + $0x70] sm:$0xff]
  %v38 = vld [vmem:[%s2 + $0x78] sm:$0xff]
  %v39 = vld [vmem:[%s2 + $0x80] sm:$0xff]
  %v40 = vld [vmem:[%s2 + $0x88] sm:$0xff]
  %v41 = vld [vmem:[%s2 + $0x90] sm:$0xff]
  %v42 = vld [vmem:[%s2 + $0x98] sm:$0xff]
  %v43 = vld [vmem:[%s2 + $0xa0] sm:$0xff]
  %v44 = vld [vmem:[%s2 + $0xa8] sm:$0xff]
  %v45 = vld [vmem:[%s2 + $0xb0] sm:$0xff]
  %v46 = vld [vmem:[%s2 + $0xb8] sm:$0xff]
  %v47 = vld [vmem:[%s2 + $0xc0] sm:$0xff]
  %v48 = vld [vmem:[%s2 + $0xc8] sm:$0xff]
  %v49 = vld [vmem:[%s2 + $0xd0] sm:$0xff]
  %v50 = vld [vmem:[%s2 + $0xd8] sm:$0xff]
  %v51 = vld [vmem:[%s2 + $0xe0] sm:$0xff]
  %v52 = vld [vmem:[%s2 + $0xe8] sm:$0xff]
  %v53 = vld [vmem:[%s2 + $0xf0] sm:$0xff]
  %v54 = vld [vmem:[%s2 + $0xf8] sm:$0xff]
  %v55 = vld [vmem:[%s2 + $0x100] sm:$0xff]
  %v56 = vld [vmem:[%s2 + $0x108] sm:$0xff]
  %v57 = vld [vmem:[%s2 + $0x110] sm:$0xff]
  %v58 = vld [vmem:[%s2 + $0x118] sm:$0xff]
  %v59 = vld [vmem:[%s2 + $0x120] sm:$0xff]
  %v60 = vld [vmem:[%s2 + $0x128] sm:$0xff]
  %v61 = vld [vmem:[%s2 + $0x130] sm:$0xff]
  %v62 = vld [vmem:[%s2 + $0x138] sm:$0xff]
  %v63 = vld [vmem:[%s2 + $0x140] sm:$0xff]
  %v64 = vld [vmem:[%s2 + $0x148] sm:$0xff]
  %v65 = vld [vmem:[%s2 + $0x150] sm:$0xff]
  %v66 = vld [vmem:[%s2 + $0x158] sm:$0xff]
  %v67 = vld [vmem:[%s2 + $0x160] sm:$0xff]
  %v68 = vld [vmem:[%s2 + $0x168] sm:$0xff]
  %v69 = vld [vmem:[%s2 + $0x170] sm:$0xff]
  %v70 = vld [vmem:[%s2 + $0x178] sm:$0xff]
  %v71 = vld [vmem:[%s2 + $0x180] sm:$0xff]
  %v72 = vld [vmem:[%s2 + $0x188] sm:$0xff]
  %v73 = vld [vmem:[%s2 + $0x190] sm:$0xff]
  %v74 = vld [vmem:[%s2 + $0x198] sm:$0xff]
  %v75 = vld [vmem:[%s2 + $0x1a0] sm:$0xf]
  %v76 = vld [vmem:[%s2 + $0x1a8] sm:$0xf]
  %v77 = vld [vmem:[%s2 + $0x1b0] sm:$0xf]
  %v78 = vld [vmem:[%s2 + $0x1b8] sm:$0xf]
  %v79 = vld [vmem:[%s1] sm:$0xff]
  %v80 = vld [vmem:[%s1 + $0x8] sm:$0xff]
  %v81 = vld [vmem:[%s1 + $0x10] sm:$0xff]
  %v82 = vld [vmem:[%s1 + $0x18] sm:$0xff]
  %84 = vset.pattern.permute.xlu0 0
  %85 = vperm.xlu0 %84, %v79
  %v86 = vpop.permute.xlu0 %85
  %89 = vset.pattern.permute.xlu0 0
  %90 = vperm.xlu0 %89, %v80
  %v91 = vpop.permute.xlu0 %90
  %94 = vset.pattern.permute.xlu0 0
  %95 = vperm.xlu0 %94, %v81
  %v96 = vpop.permute.xlu0 %95
  %99 = vset.pattern.permute.xlu0 0
  %100 = vperm.xlu0 %99, %v82
  %v101 = vpop.permute.xlu0 %100
  %vm103 = vcmask 883712
  %v105 = vsel %vm103, %v19, 0
  %v108 = vsel %vm103, %v20, 0
  %v111 = vsel %vm103, %v21, 0
  %v114 = vsel %vm103, %v22, 0
  %vm116 = vcmask 1043456
  %v118 = vsel %vm116, %v75, 0
  %v121 = vsel %vm116, %v76, 0
  %v124 = vsel %vm116, %v77, 0
  %v127 = vsel %vm116, %v78, 0
  %129 = vmatpush.msra.mxu0 0.0
  %130 = vmatpush.msra.mxu0 0.0
  %131 = vmatpush.msra.mxu0 %v118
  %132 = vmatpush.msra.mxu0 %v71
  %133 = vmatpush.msra.mxu0 %v67
  %134 = vmatpush.msra.mxu0 %v63
  %135 = vmatpush.msra.mxu0 %v59
  %136 = vmatpush.msra.mxu0 %v55
  %137 = vmatpush.msra.mxu0 %v51
  %138 = vmatpush.msra.mxu0 %v47
  %139 = vmatpush.msra.mxu0 %v43
  %140 = vmatpush.msra.mxu0 %v39
  %141 = vmatpush.msra.mxu0 %v35
  %142 = vmatpush.msra.mxu0 %v31
  %143 = vmatpush.msra.mxu0 %v27
  %144 = vmatpush.msra.mxu0 %v23
  %145 = vmatmul.f32.gmra.mxu0 %v105
  %v146 = vpop.f32.mrf.mxu0
  %v147 = vadd.f32 %v86, %v146
  %148 = vmatmul.f32.gmra.mxu0 %v108
  %v149 = vpop.f32.mrf.mxu0
  %v150 = vadd.f32 %v91, %v149
  %151 = vmatmul.f32.gmra.mxu0 %v111
  %v152 = vpop.f32.mrf.mxu0
  %v153 = vadd.f32 %v96, %v152
  %154 = vmatmul.f32.gmra.mxu0 %v114
  %v155 = vpop.f32.mrf.mxu0
  %v156 = vadd.f32 %v101, %v155
  %157 = vdwg.mxu0
  %158 = vmatpush.msra.mxu0 0.0
  %159 = vmatpush.msra.mxu0 0.0
  %160 = vmatpush.msra.mxu0 %v121
  %161 = vmatpush.msra.mxu0 %v72
  %162 = vmatpush.msra.mxu0 %v68
  %163 = vmatpush.msra.mxu0 %v64
  %164 = vmatpush.msra.mxu0 %v60
  %165 = vmatpush.msra.mxu0 %v56
  %166 = vmatpush.msra.mxu0 %v52
  %167 = vmatpush.msra.mxu0 %v48
  %168 = vmatpush.msra.mxu0 %v44
  %169 = vmatpush.msra.mxu0 %v40
  %170 = vmatpush.msra.mxu0 %v36
  %171 = vmatpush.msra.mxu0 %v32
  %172 = vmatpush.msra.mxu0 %v28
  %173 = vmatpush.msra.mxu0 %v24
  %174 = vmatmul.f32.gmra.mxu0 %v105
  %v175 = vpop.f32.mrf.mxu0
  %v176 = vadd.f32 %v86, %v175
  %177 = vmatmul.f32.gmra.mxu0 %v108
  %v178 = vpop.f32.mrf.mxu0
  %v179 = vadd.f32 %v91, %v178
  %180 = vmatmul.f32.gmra.mxu0 %v111
  %v181 = vpop.f32.mrf.mxu0
  %v182 = vadd.f32 %v96, %v181
  %183 = vmatmul.f32.gmra.mxu0 %v114
  %v184 = vpop.f32.mrf.mxu0
  %v185 = vadd.f32 %v101, %v184
  %186 = vdwg.mxu0
  %187 = vmatpush.msra.mxu0 0.0
  %188 = vmatpush.msra.mxu0 0.0
  %189 = vmatpush.msra.mxu0 %v124
  %190 = vmatpush.msra.mxu0 %v73
  %191 = vmatpush.msra.mxu0 %v69
  %192 = vmatpush.msra.mxu0 %v65
  %193 = vmatpush.msra.mxu0 %v61
  %194 = vmatpush.msra.mxu0 %v57
  %195 = vmatpush.msra.mxu0 %v53
  %196 = vmatpush.msra.mxu0 %v49
  %197 = vmatpush.msra.mxu0 %v45
  %198 = vmatpush.msra.mxu0 %v41
  %199 = vmatpush.msra.mxu0 %v37
  %200 = vmatpush.msra.mxu0 %v33
  %201 = vmatpush.msra.mxu0 %v29
  %202 = vmatpush.msra.mxu0 %v25
  %203 = vmatmul.f32.gmra.mxu0 %v105
  %v204 = vpop.f32.mrf.mxu0
  %v205 = vadd.f32 %v86, %v204
  %206 = vmatmul.f32.gmra.mxu0 %v108
  %v207 = vpop.f32.mrf.mxu0
  %v208 = vadd.f32 %v91, %v207
  %209 = vmatmul.f32.gmra.mxu0 %v111
  %v210 = vpop.f32.mrf.mxu0
  %v211 = vadd.f32 %v96, %v210
  %212 = vmatmul.f32.gmra.mxu0 %v114
  %v213 = vpop.f32.mrf.mxu0
  %v214 = vadd.f32 %v101, %v213
  %215 = vdwg.mxu0
  %216 = vmatpush.msra.mxu0 0.0
  %217 = vmatpush.msra.mxu0 0.0
  %218 = vmatpush.msra.mxu0 %v127
  %219 = vmatpush.msra.mxu0 %v74
  %220 = vmatpush.msra.mxu0 %v70
  %221 = vmatpush.msra.mxu0 %v66
  %222 = vmatpush.msra.mxu0 %v62
  %223 = vmatpush.msra.mxu0 %v58
  %224 = vmatpush.msra.mxu0 %v54
  %225 = vmatpush.msra.mxu0 %v50
  %226 = vmatpush.msra.mxu0 %v46
  %227 = vmatpush.msra.mxu0 %v42
  %228 = vmatpush.msra.mxu0 %v38
  %229 = vmatpush.msra.mxu0 %v34
  %230 = vmatpush.msra.mxu0 %v30
  %231 = vmatpush.msra.mxu0 %v26
  %232 = vmatmul.f32.gmra.mxu0 %v105
  %v233 = vpop.f32.mrf.mxu0
  %v234 = vadd.f32 %v86, %v233
  %235 = vmatmul.f32.gmra.mxu0 %v108
  %v236 = vpop.f32.mrf.mxu0
  %v237 = vadd.f32 %v91, %v236
  %238 = vmatmul.f32.gmra.mxu0 %v111
  %v239 = vpop.f32.mrf.mxu0
  %v240 = vadd.f32 %v96, %v239
  %241 = vmatmul.f32.gmra.mxu0 %v114
  %v242 = vpop.f32.mrf.mxu0
  %v243 = vadd.f32 %v101, %v242
  %244 = vdwg.mxu0
  %v245 = vxor.u32 %v147, 2147483648
  %v246 = vxor.u32 %v176, 2147483648
  %v247 = vxor.u32 %v205, 2147483648
  %v248 = vxor.u32 %v234, 2147483648
  %v249 = vmul.f32 %v245, 1.442695
  %v250 = vpow.pop %v249
  %v251 = vmul.f32 %v246, 1.442695
  %v252 = vpow.pop %v251
  %v253 = vmul.f32 %v247, 1.442695
  %v254 = vpow.pop %v253
  %v255 = vmul.f32 %v248, 1.442695
  %v256 = vpow.pop %v255
  %v257 = vadd.f32 %v250, 1.0
  %v258 = vadd.f32 %v252, 1.0
  %v259 = vadd.f32 %v254, 1.0
  %v260 = vadd.f32 %v256, 1.0
  %v261 = vrcp.pop %v257
  %v262 = vmul.f32 %v257, %v261
  %v263 = vsub.f32 1.0, %v262
  %v264 = vmul.f32 %v261, %v263
  %v265 = vadd.f32 %v261, %v264
  %vm266 = vweird.f32 %v257
  %vm267 = vweird.f32 %v261
  %vm268 = vmor %vm266, %vm267
  %v269 = vsel %vm268, %v261, %v265
  %v270 = vand.u32 2147483647, %v257
  %vm271 = vcmp.eq.f32.partialorder %v270, 8.507059e+37
  %v272 = vand.u32 %v257, 2147483648
  %v273 = vor.u32 1.1754944e-38, %v272
  %v274 = vsel %vm271, %v273, %v269
  %v275 = vmul.f32 1.0, %v274
  %v276 = vrcp.pop %v258
  %v277 = vmul.f32 %v258, %v276
  %v278 = vsub.f32 1.0, %v277
  %v279 = vmul.f32 %v276, %v278
  %v280 = vadd.f32 %v276, %v279
  %vm281 = vweird.f32 %v258
  %vm282 = vweird.f32 %v276
  %vm283 = vmor %vm281, %vm282
  %v284 = vsel %vm283, %v276, %v280
  %v285 = vand.u32 2147483647, %v258
  %vm286 = vcmp.eq.f32.partialorder %v285, 8.507059e+37
  %v287 = vand.u32 %v258, 2147483648
  %v288 = vor.u32 1.1754944e-38, %v287
  %v289 = vsel %vm286, %v288, %v284
  %v290 = vmul.f32 1.0, %v289
  %v291 = vrcp.pop %v259
  %v292 = vmul.f32 %v259, %v291
  %v293 = vsub.f32 1.0, %v292
  %v294 = vmul.f32 %v291, %v293
  %v295 = vadd.f32 %v291, %v294
  %vm296 = vweird.f32 %v259
  %vm297 = vweird.f32 %v291
  %vm298 = vmor %vm296, %vm297
  %v299 = vsel %vm298, %v291, %v295
  %v300 = vand.u32 2147483647, %v259
  %vm301 = vcmp.eq.f32.partialorder %v300, 8.507059e+37
  %v302 = vand.u32 %v259, 2147483648
  %v303 = vor.u32 1.1754944e-38, %v302
  %v304 = vsel %vm301, %v303, %v299
  %v305 = vmul.f32 1.0, %v304
  %v306 = vrcp.pop %v260
  %v307 = vmul.f32 %v260, %v306
  %v308 = vsub.f32 1.0, %v307
  %v309 = vmul.f32 %v306, %v308
  %v310 = vadd.f32 %v306, %v309
  %vm311 = vweird.f32 %v260
  %vm312 = vweird.f32 %v306
  %vm313 = vmor %vm311, %vm312
  %v314 = vsel %vm313, %v306, %v310
  %v315 = vand.u32 2147483647, %v260
  %vm316 = vcmp.eq.f32.partialorder %v315, 8.507059e+37
  %v317 = vand.u32 %v260, 2147483648
  %v318 = vor.u32 1.1754944e-38, %v317
  %v319 = vsel %vm316, %v318, %v314
  %v320 = vmul.f32 1.0, %v319
  %v321 = vxor.u32 %v150, 2147483648
  %v322 = vxor.u32 %v179, 2147483648
  %v323 = vxor.u32 %v208, 2147483648
  %v324 = vxor.u32 %v237, 2147483648
  %v325 = vmul.f32 %v321, 1.442695
  %v326 = vpow.pop %v325
  %v327 = vmul.f32 %v322, 1.442695
  %v328 = vpow.pop %v327
  %v329 = vmul.f32 %v323, 1.442695
  %v330 = vpow.pop %v329
  %v331 = vmul.f32 %v324, 1.442695
  %v332 = vpow.pop %v331
  %v333 = vadd.f32 %v326, 1.0
  %v334 = vadd.f32 %v328, 1.0
  %v335 = vadd.f32 %v330, 1.0
  %v336 = vadd.f32 %v332, 1.0
  %v337 = vrcp.pop %v333
  %v338 = vmul.f32 %v333, %v337
  %v339 = vsub.f32 1.0, %v338
  %v340 = vmul.f32 %v337, %v339
  %v341 = vadd.f32 %v337, %v340
  %vm342 = vweird.f32 %v333
  %vm343 = vweird.f32 %v337
  %vm344 = vmor %vm342, %vm343
  %v345 = vsel %vm344, %v337, %v341
  %v346 = vand.u32 2147483647, %v333
  %vm347 = vcmp.eq.f32.partialorder %v346, 8.507059e+37
  %v348 = vand.u32 %v333, 2147483648
  %v349 = vor.u32 1.1754944e-38, %v348
  %v350 = vsel %vm347, %v349, %v345
  %v351 = vmul.f32 1.0, %v350
  %v352 = vrcp.pop %v334
  %v353 = vmul.f32 %v334, %v352
  %v354 = vsub.f32 1.0, %v353
  %v355 = vmul.f32 %v352, %v354
  %v356 = vadd.f32 %v352, %v355
  %vm357 = vweird.f32 %v334
  %vm358 = vweird.f32 %v352
  %vm359 = vmor %vm357, %vm358
  %v360 = vsel %vm359, %v352, %v356
  %v361 = vand.u32 2147483647, %v334
  %vm362 = vcmp.eq.f32.partialorder %v361, 8.507059e+37
  %v363 = vand.u32 %v334, 2147483648
  %v364 = vor.u32 1.1754944e-38, %v363
  %v365 = vsel %vm362, %v364, %v360
  %v366 = vmul.f32 1.0, %v365
  %v367 = vrcp.pop %v335
  %v368 = vmul.f32 %v335, %v367
  %v369 = vsub.f32 1.0, %v368
  %v370 = vmul.f32 %v367, %v369
  %v371 = vadd.f32 %v367, %v370
  %vm372 = vweird.f32 %v335
  %vm373 = vweird.f32 %v367
  %vm374 = vmor %vm372, %vm373
  %v375 = vsel %vm374, %v367, %v371
  %v376 = vand.u32 2147483647, %v335
  %vm377 = vcmp.eq.f32.partialorder %v376, 8.507059e+37
  %v378 = vand.u32 %v335, 2147483648
  %v379 = vor.u32 1.1754944e-38, %v378
  %v380 = vsel %vm377, %v379, %v375
  %v381 = vmul.f32 1.0, %v380
  %v382 = vrcp.pop %v336
  %v383 = vmul.f32 %v336, %v382
  %v384 = vsub.f32 1.0, %v383
  %v385 = vmul.f32 %v382, %v384
  %v386 = vadd.f32 %v382, %v385
  %vm387 = vweird.f32 %v336
  %vm388 = vweird.f32 %v382
  %vm389 = vmor %vm387, %vm388
  %v390 = vsel %vm389, %v382, %v386
  %v391 = vand.u32 2147483647, %v336
  %vm392 = vcmp.eq.f32.partialorder %v391, 8.507059e+37
  %v393 = vand.u32 %v336, 2147483648
  %v394 = vor.u32 1.1754944e-38, %v393
  %v395 = vsel %vm392, %v394, %v390
  %v396 = vmul.f32 1.0, %v395
  %v397 = vtanh.pop %v153
  %v398 = vtanh.pop %v182
  %v399 = vtanh.pop %v211
  %v400 = vtanh.pop %v240
  %v401 = vxor.u32 %v156, 2147483648
  %v402 = vxor.u32 %v185, 2147483648
  %v403 = vxor.u32 %v214, 2147483648
  %v404 = vxor.u32 %v243, 2147483648
  %v405 = vmul.f32 %v401, 1.442695
  %v406 = vpow.pop %v405
  %v407 = vmul.f32 %v402, 1.442695
  %v408 = vpow.pop %v407
  %v409 = vmul.f32 %v403, 1.442695
  %v410 = vpow.pop %v409
  %v411 = vmul.f32 %v404, 1.442695
  %v412 = vpow.pop %v411
  %v413 = vadd.f32 %v406, 1.0
  %v414 = vadd.f32 %v408, 1.0
  %v415 = vadd.f32 %v410, 1.0
  %v416 = vadd.f32 %v412, 1.0
  %v417 = vrcp.pop %v413
  %v418 = vmul.f32 %v413, %v417
  %v419 = vsub.f32 1.0, %v418
  %v420 = vmul.f32 %v417, %v419
  %v421 = vadd.f32 %v417, %v420
  %vm422 = vweird.f32 %v413
  %vm423 = vweird.f32 %v417
  %vm424 = vmor %vm422, %vm423
  %v425 = vsel %vm424, %v417, %v421
  %v426 = vand.u32 2147483647, %v413
  %vm427 = vcmp.eq.f32.partialorder %v426, 8.507059e+37
  %v428 = vand.u32 %v413, 2147483648
  %v429 = vor.u32 1.1754944e-38, %v428
  %v430 = vsel %vm427, %v429, %v425
  %v431 = vmul.f32 1.0, %v430
  %v432 = vrcp.pop %v414
  %v433 = vmul.f32 %v414, %v432
  %v434 = vsub.f32 1.0, %v433
  %v435 = vmul.f32 %v432, %v434
  %v436 = vadd.f32 %v432, %v435
  %vm437 = vweird.f32 %v414
  %vm438 = vweird.f32 %v432
  %vm439 = vmor %vm437, %vm438
  %v440 = vsel %vm439, %v432, %v436
  %v441 = vand.u32 2147483647, %v414
  %vm442 = vcmp.eq.f32.partialorder %v441, 8.507059e+37
  %v443 = vand.u32 %v414, 2147483648
  %v444 = vor.u32 1.1754944e-38, %v443
  %v445 = vsel %vm442, %v444, %v440
  %v446 = vmul.f32 1.0, %v445
  %v447 = vrcp.pop %v415
  %v448 = vmul.f32 %v415, %v447
  %v449 = vsub.f32 1.0, %v448
  %v450 = vmul.f32 %v447, %v449
  %v451 = vadd.f32 %v447, %v450
  %vm452 = vweird.f32 %v415
  %vm453 = vweird.f32 %v447
  %vm454 = vmor %vm452, %vm453
  %v455 = vsel %vm454, %v447, %v451
  %v456 = vand.u32 2147483647, %v415
  %vm457 = vcmp.eq.f32.partialorder %v456, 8.507059e+37
  %v458 = vand.u32 %v415, 2147483648
  %v459 = vor.u32 1.1754944e-38, %v458
  %v460 = vsel %vm457, %v459, %v455
  %v461 = vmul.f32 1.0, %v460
  %v462 = vrcp.pop %v416
  %v463 = vmul.f32 %v416, %v462
  %v464 = vsub.f32 1.0, %v463
  %v465 = vmul.f32 %v462, %v464
  %v466 = vadd.f32 %v462, %v465
  %vm467 = vweird.f32 %v416
  %vm468 = vweird.f32 %v462
  %vm469 = vmor %vm467, %vm468
  %v470 = vsel %vm469, %v462, %v466
  %v471 = vand.u32 2147483647, %v416
  %vm472 = vcmp.eq.f32.partialorder %v471, 8.507059e+37
  %v473 = vand.u32 %v416, 2147483648
  %v474 = vor.u32 1.1754944e-38, %v473
  %v475 = vsel %vm472, %v474, %v470
  %v476 = vmul.f32 1.0, %v475
  %v477 = vld [vmem:[%s3] sm:$0xff]
  %v478 = vld [vmem:[%s3 + $0x8] sm:$0xff]
  %v479 = vld [vmem:[%s3 + $0x10] sm:$0xff]
  %v480 = vld [vmem:[%s3 + $0x18] sm:$0xff]
  %v481 = vmul.f32 %v275, %v477
  %v482 = vmul.f32 %v290, %v478
  %v483 = vmul.f32 %v305, %v479
  %v484 = vmul.f32 %v320, %v480
  %v485 = vmul.f32 %v351, %v397
  %v486 = vmul.f32 %v366, %v398
  %v487 = vmul.f32 %v381, %v399
  %v488 = vmul.f32 %v396, %v400
  %v489 = vadd.f32 %v481, %v485
  %v490 = vadd.f32 %v482, %v486
  %v491 = vadd.f32 %v483, %v487
  %v492 = vadd.f32 %v484, %v488
  %v493 = vtanh.pop %v489
  %v494 = vtanh.pop %v490
  %v495 = vtanh.pop %v491
  %v496 = vtanh.pop %v492
  %v497 = vmul.f32 %v431, %v493
  %v498 = vmul.f32 %v446, %v494
  %v499 = vmul.f32 %v461, %v495
  %v500 = vmul.f32 %v476, %v496
  %501 = vst [vmem:[%s5] sm:$0xff] %v489
  %502 = vst [vmem:[%s5 + $0x8] sm:$0xff] %v490
  %503 = vst [vmem:[%s5 + $0x10] sm:$0xff] %v491
  %504 = vst [vmem:[%s5 + $0x18] sm:$0xff] %v492
  %505 = vst [vmem:[%s4] sm:$0xff] %v497
  %506 = vst [vmem:[%s4 + $0x8] sm:$0xff] %v498
  %507 = vst [vmem:[%s4 + $0x10] sm:$0xff] %v499
  %508 = vst [vmem:[%s4 + $0x18] sm:$0xff] %v500
  // Predicated region
  $region18: #{convlstm_cell_forward.1} parent=0 // pred_check
    _
  $region19: #{convlstm_cell_forward.1} parent=0 // pred_check_branch
    %510 = sbr.rel (0) target = $region21
  $region20: #{convlstm_cell_forward.1} parent=0 // pred_region
    _
  $region21: #{convlstm_cell_forward.1} parent=0 // pred_fallthru
    _
  // Predicated region
  $region22: #{convlstm_cell_forward.1} parent=0 // pred_check
    _
  $region23: #{convlstm_cell_forward.1} parent=0 // pred_check_branch
    %512 = sbr.rel (0) target = $region25
  $region24: #{convlstm_cell_forward.1} parent=0 // pred_region
    _
  $region25: #{convlstm_cell_forward.1} parent=0 // pred_fallthru
    _
  // Predicated region
  $region26: #{convlstm_cell_forward.1} parent=0 // pred_check
    _
  $region27: #{convlstm_cell_forward.1} parent=0 // pred_check_branch
    %514 = sbr.rel (0) target = $region29
  $region28: #{convlstm_cell_forward.1} parent=0 // pred_region
    _
  $region29: #{convlstm_cell_forward.1} parent=0 // pred_fallthru
    _
  // Predicated region
  $region30: #{convlstm_cell_forward.1} parent=0 // pred_check
    _
  $region31: #{convlstm_cell_forward.1} parent=0 // pred_check_branch
    %516 = sbr.rel (0) target = $region33
  $region32: #{convlstm_cell_forward.1} parent=0 // pred_region
    _
  $region33: #{convlstm_cell_forward.1} parent=0 // pred_fallthru
    _

</llo_original>
